<compile_context>
chip_gen: v6e
topology: v6e:2x2x1
jax: 0.10.0
libtpu: 0.0.40
codegen_flags: <defaults>
</compile_context>

<pallas_src>
import jax
import jax.numpy as jnp
from jax.experimental import pallas as pl
from jax.experimental.pallas import tpu as pltpu

B, S, D = 2, 8, 32          # batch, seq, hidden
H, HD = 4, 8                # heads, head dim (H * HD == D)
I = 64                      # MLP intermediate size
BS = B * S                  # flattened token count (16)
HBS = H * BS                # head-stacked row count (64)
EPS = 1e-5
SCALE = 1.0 / (HD ** 0.5)
NEG_INF = -1e30

# ---- packed weight slab (32, 384) column layout ----
_W_GU = (0, 128)            # [wg | wu], ln2 gamma folded into rows
_W_QKV = (128, 288)         # [wq*s | (wq@rot)*s | wk | wk@rot | wv], ln1 gamma folded
_W_O = (288, 320)           # wo
_W_DT = (320, 384)          # wd^T  (32, 64)

# ---- packed constants slab (64, 128) column layout ----
_C_HM = (0, 32)             # per-head 0/1 masks, each broadcast over its 16 sublane rows
_C_BIAS = (32, 48)          # causal + same-batch additive bias, tiled x4 per head block
_C_CS = 64                  # rows 0:16 -> cos (BS, D); rows 16:32 -> sin (BS, D)


def _decoder_layer_kernel(x_ref, w_ref, c_ref, o_ref):
    x = x_ref[...]                                               # (16, 32) f32

    hmask = c_ref[:, _C_HM[0]:_C_HM[1]]                          # (64, 32)
    bias = c_ref[:, _C_BIAS[0]:_C_BIAS[1]]                       # (64, 16)
    cos = c_ref[0:BS, _C_CS:_C_CS + D]                           # (16, 32)
    sin = c_ref[BS:2 * BS, _C_CS:_C_CS + D]                      # (16, 32)

    # ---- input_layernorm (RMSNorm; gamma folded into Wqkv rows) ----
    xn = x * jax.lax.rsqrt(jnp.mean(x * x, axis=-1, keepdims=True) + EPS)

    # ---- fused Q/Q_rot/K/K_rot/V projection: one wide MXU dot ----
    proj = jnp.dot(xn, w_ref[:, _W_QKV[0]:_W_QKV[1]],
                   preferred_element_type=jnp.float32)           # (16, 160)
    # RoPE as elementwise mul-add (rotate_half + 1/sqrt(HD) folded into the weights)
    q = proj[:, 0:D] * cos + proj[:, D:2 * D] * sin
    k = proj[:, 2 * D:3 * D] * cos + proj[:, 3 * D:4 * D] * sin
    v = proj[:, 4 * D:5 * D]

    # ---- all heads at once: heads stacked along the sublane axis ----
    qs = jnp.concatenate([q, q, q, q], axis=0) * hmask           # (64, 32)
    s = jax.lax.dot_general(qs, k, (((1,), (1,)), ((), ())),
                            preferred_element_type=jnp.float32) + bias   # (64, 16)
    s = s - jnp.max(s, axis=-1, keepdims=True)
    p = jnp.exp(s)
    p = p / jnp.sum(p, axis=-1, keepdims=True)                   # exact divide (VALU slack)
    pv = jnp.dot(p, v, preferred_element_type=jnp.float32) * hmask       # (64, 32)
    # collapse the 4 head blocks (aligned sublane slices -> 3 cheap VPU adds)
    heads = pv[0:BS] + pv[BS:2 * BS] + pv[2 * BS:3 * BS] + pv[3 * BS:4 * BS]  # (16, 32)
    attn = jnp.dot(heads, w_ref[:, _W_O[0]:_W_O[1]],
                   preferred_element_type=jnp.float32)

    # resid_attn_dropout: identity (eval mode)
    x1 = x + attn

    # ---- post_attention_layernorm (gamma folded into Wgu rows) + SiLU-gated MLP ----
    xn2 = x1 * jax.lax.rsqrt(jnp.mean(x1 * x1, axis=-1, keepdims=True) + EPS)
    gu = jnp.dot(xn2, w_ref[:, _W_GU[0]:_W_GU[1]],
                 preferred_element_type=jnp.float32)             # (16, 128)
    g, u = gu[:, 0:I], gu[:, I:2 * I]
    act = (g * jax.nn.sigmoid(g)) * u                            # (16, 64)
    mlp = jax.lax.dot_general(act, w_ref[:, _W_DT[0]:_W_DT[1]],
                              (((1,), (1,)), ((), ())),
                              preferred_element_type=jnp.float32)  # act @ wd = (16, 32)

    # resid_mlp_dropout: identity (eval mode)
    o_ref[...] = x1 + mlp


_decoder_layer_call = pl.pallas_call(
    _decoder_layer_kernel,
    out_shape=jax.ShapeDtypeStruct((BS, D), jnp.float32),
    # No grid: everything (~80 KB) is resident in VMEM for a single invocation.
    in_specs=[pl.BlockSpec(memory_space=pltpu.MemorySpace.VMEM)] * 3,
    out_specs=pl.BlockSpec(memory_space=pltpu.MemorySpace.VMEM),
)


# ---------------- wrapper: slab packing (RoPE / masks / weight folding) ----------------

def _rope_tables(position_ids):
    """cos/sin tables of shape (S, D), tiled identically across heads."""
    inv_freq = 1.0 / (10000.0 ** (jnp.arange(0, HD, 2, dtype=jnp.float32) / HD))
    ang = position_ids.astype(jnp.float32)[:, None] * inv_freq[None, :]   # (S, HD//2)
    emb = jnp.concatenate([ang, ang], axis=-1)                            # (S, HD)
    cos_f = jnp.tile(jnp.cos(emb), (1, H))                                # (S, D)
    sin_f = jnp.tile(jnp.sin(emb), (1, H))                                # (S, D)
    return cos_f, sin_f


def _rotate_half_matrix():
    half = HD // 2
    r = jnp.zeros((HD, HD), jnp.float32)
    r = r.at[jnp.arange(half) + half, jnp.arange(half)].set(-1.0)
    r = r.at[jnp.arange(half), jnp.arange(half) + half].set(1.0)
    return jnp.kron(jnp.eye(H, dtype=jnp.float32), r)                     # (D, D)


def _attn_bias():
    """(BS, BS) additive mask: 0 where (same batch AND causal), else -1e30."""
    idx = jnp.arange(BS, dtype=jnp.int32)
    row, col = idx[:, None], idx[None, :]
    allowed = (col <= row) & ((row // S) == (col // S))
    return jnp.where(allowed, 0.0, NEG_INF).astype(jnp.float32)


def _head_masks():
    """(H, D) 0/1 masks selecting each head's contiguous HD columns."""
    lane = jnp.arange(D, dtype=jnp.int32)
    return (lane[None, :] // HD == jnp.arange(H, dtype=jnp.int32)[:, None]).astype(jnp.float32)


def _pack_weight_slab(ln1, ln2, wq, wk, wv, wo, wg, wu, wd):
    """(32, 384): RMSNorm gammas, RoPE rotation and 1/sqrt(HD) folded into the weights."""
    rot = _rotate_half_matrix()
    g1 = ln1[0][:, None]                                                  # (D, 1)
    g2 = ln2[0][:, None]
    wqkv = jnp.concatenate([g1 * wq * SCALE, g1 * (wq @ rot) * SCALE,
                            g1 * wk, g1 * (wk @ rot), g1 * wv], axis=1)   # (32, 160)
    wgu = jnp.concatenate([g2 * wg, g2 * wu], axis=1)                     # (32, 128)
    return jnp.concatenate([wgu, wqkv, wo, wd.T], axis=1)                 # (32, 384)


def _pack_const_slab(position_ids):
    """(64, 128): head masks | causal bias (x4) | cos/sin, lane-padded to 128."""
    cos_sd, sin_sd = _rope_tables(position_ids)
    cosf = jnp.tile(cos_sd, (B, 1))                                       # (BS, D)
    sinf = jnp.tile(sin_sd, (B, 1))
    hm_big = jnp.repeat(_head_masks(), BS, axis=0)                        # (64, 32)
    bias_big = jnp.tile(_attn_bias(), (H, 1))                             # (64, 16)
    c = jnp.zeros((HBS, 128), jnp.float32)
    c = c.at[:, _C_HM[0]:_C_HM[1]].set(hm_big)
    c = c.at[:, _C_BIAS[0]:_C_BIAS[1]].set(bias_big)
    c = c.at[0:BS, _C_CS:_C_CS + D].set(cosf)
    c = c.at[BS:2 * BS, _C_CS:_C_CS + D].set(sinf)
    return c


@jax.jit
def decoder_layer_block(x, position_ids, ln1, ln2, wq, wk, wv, wo, wg, wu, wd):
    # In a real model the two slabs are position/weight-only and would be built once
    # and cached; here they are rebuilt per call inside the jit for simplicity.
    w_slab = _pack_weight_slab(ln1, ln2, wq, wk, wv, wo, wg, wu, wd)
    c_slab = _pack_const_slab(position_ids)
    out = _decoder_layer_call(x.reshape(BS, D), w_slab, c_slab)
    return out.reshape(B, S, D)


# ---------------- pure-JAX reference (matches PyTorch math) ----------------

def _reference(x, cos_f, sin_f, rot, ln1, ln2, wq, wk, wv, wo, wg, wu, wd):
    def one(xb):
        var = jnp.mean(xb * xb, axis=-1, keepdims=True)
        xn = xb * jax.lax.rsqrt(var + EPS) * ln1[0]
        q, k, v = xn @ wq, xn @ wk, xn @ wv
        q = q * cos_f + (q @ rot) * sin_f
        k = k * cos_f + (k @ rot) * sin_f
        row = jnp.arange(S)[:, None]
        col = jnp.arange(S)[None, :]
        causal = col <= row
        outs = []
        for h in range(H):
            sl = slice(h * HD, (h + 1) * HD)
            s = (q[:, sl] @ k[:, sl].T) * SCALE
            s = jnp.where(causal, s, NEG_INF)
            s = s - jnp.max(s, axis=-1, keepdims=True)
            p = jnp.exp(s)
            p = p / jnp.sum(p, axis=-1, keepdims=True)
            outs.append(p @ v[:, sl])
        attn = jnp.concatenate(outs, axis=-1) @ wo
        x1 = xb + attn
        var2 = jnp.mean(x1 * x1, axis=-1, keepdims=True)
        xn2 = x1 * jax.lax.rsqrt(var2 + EPS) * ln2[0]
        g, u = xn2 @ wg, xn2 @ wu
        return x1 + ((g * jax.nn.sigmoid(g)) * u) @ wd
    return jax.vmap(one)(x)


if __name__ == "__main__":
    key = jax.random.PRNGKey(0)
    ks = jax.random.split(key, 12)
    x = jax.random.normal(ks[0], (B, S, D), jnp.float32)
    ln1 = 1.0 + 0.1 * jax.random.normal(ks[1], (1, D), jnp.float32)
    ln2 = 1.0 + 0.1 * jax.random.normal(ks[2], (1, D), jnp.float32)
    sc = 0.05
    wq = sc * jax.random.normal(ks[3], (D, D), jnp.float32)
    wk = sc * jax.random.normal(ks[4], (D, D), jnp.float32)
    wv = sc * jax.random.normal(ks[5], (D, D), jnp.float32)
    wo = sc * jax.random.normal(ks[6], (D, D), jnp.float32)
    wg = sc * jax.random.normal(ks[7], (D, I), jnp.float32)
    wu = sc * jax.random.normal(ks[8], (D, I), jnp.float32)
    wd = sc * jax.random.normal(ks[9], (I, D), jnp.float32)

    position_ids = jnp.arange(S, dtype=jnp.int32)            # default position_ids

    out = decoder_layer_block(x, position_ids, ln1, ln2, wq, wk, wv, wo, wg, wu, wd)
    out = jax.block_until_ready(out)

    cos_sd, sin_sd = _rope_tables(position_ids)
    rot = _rotate_half_matrix()
    ref = _reference(x, cos_sd, sin_sd, rot, ln1, ln2, wq, wk, wv, wo, wg, wu, wd)

    assert out.shape == (B, S, D)
    assert jnp.allclose(out, ref, atol=1e-4, rtol=1e-4), "mismatch vs reference"
    print("KERNEL_OK")
</pallas_src>

<mosaic_0001>
module attributes {stable_mosaic.version = 11 : i64} {
  func.func @_decoder_layer_kernel(%arg0: memref<16x32xf32, #tpu.memory_space<vmem>>, %arg1: memref<32x384xf32, #tpu.memory_space<vmem>>, %arg2: memref<64x128xf32, #tpu.memory_space<vmem>>, %arg3: memref<16x32xf32, #tpu.memory_space<vmem>>) attributes {dimension_semantics = [], scalar_prefetch = 0 : i64, scratch_operands = 0 : i64, tpu.core_type = #tpu.core_type<tc>} {
    %c0 = arith.constant 0 : index
    %c0_0 = arith.constant 0 : index
    %0 = vector.load %arg0[%c0, %c0_0] : memref<16x32xf32, #tpu.memory_space<vmem>>, vector<16x32xf32>
    %c0_1 = arith.constant 0 : index
    %c0_2 = arith.constant 0 : index
    %1 = vector.load %arg2[%c0_1, %c0_2] : memref<64x128xf32, #tpu.memory_space<vmem>>, vector<64x32xf32>
    %c0_3 = arith.constant 0 : index
    %c32 = arith.constant 32 : index
    %2 = vector.load %arg2[%c0_3, %c32] : memref<64x128xf32, #tpu.memory_space<vmem>>, vector<64x16xf32>
    %c0_4 = arith.constant 0 : index
    %c64 = arith.constant 64 : index
    %3 = vector.load %arg2[%c0_4, %c64] : memref<64x128xf32, #tpu.memory_space<vmem>>, vector<16x32xf32>
    %c16 = arith.constant 16 : index
    %c64_5 = arith.constant 64 : index
    %4 = vector.load %arg2[%c16, %c64_5] : memref<64x128xf32, #tpu.memory_space<vmem>>, vector<16x32xf32>
    %5 = arith.mulf %0, %0 : vector<16x32xf32>
    %cst = arith.constant dense<0.000000e+00> : vector<16xf32>
    %6 = vector.multi_reduction <add>, %5, %cst [1] : vector<16x32xf32> to vector<16xf32>
    %7 = vector.shape_cast %6 : vector<16xf32> to vector<16x1xf32>
    %cst_6 = arith.constant 3.200000e+01 : f32
    %8 = vector.broadcast %cst_6 : f32 to vector<16x1xf32>
    %9 = arith.divf %7, %8 : vector<16x1xf32>
    %cst_7 = arith.constant 9.99999974E-6 : f32
    %10 = vector.broadcast %cst_7 : f32 to vector<16x1xf32>
    %11 = arith.addf %9, %10 : vector<16x1xf32>
    %12 = math.rsqrt %11 : vector<16x1xf32>
    %13 = vector.broadcast %12 : vector<16x1xf32> to vector<16x32xf32>
    %14 = arith.mulf %0, %13 : vector<16x32xf32>
    %c0_8 = arith.constant 0 : index
    %c128 = arith.constant 128 : index
    %15 = vector.load %arg1[%c0_8, %c128] : memref<32x384xf32, #tpu.memory_space<vmem>>, vector<32x160xf32>
    %cst_9 = arith.constant dense<0.000000e+00> : vector<16x160xf32>
    %16 = tpu.matmul %14, %15, %cst_9 {dimension_numbers = #tpu.dot_dimension_numbers<[1], [0], [0], [1], [0, 0, 1, 1], [], []>} : vector<16x32xf32>, vector<32x160xf32>, vector<16x160xf32> -> vector<16x160xf32>
    %17 = vector.extract_strided_slice %16 {offsets = [0, 0], sizes = [16, 32], strides = [1, 1]} : vector<16x160xf32> to vector<16x32xf32>
    %18 = arith.mulf %17, %3 : vector<16x32xf32>
    %19 = vector.extract_strided_slice %16 {offsets = [0, 32], sizes = [16, 32], strides = [1, 1]} : vector<16x160xf32> to vector<16x32xf32>
    %20 = arith.mulf %19, %4 : vector<16x32xf32>
    %21 = arith.addf %18, %20 : vector<16x32xf32>
    %22 = vector.extract_strided_slice %16 {offsets = [0, 64], sizes = [16, 32], strides = [1, 1]} : vector<16x160xf32> to vector<16x32xf32>
    %23 = arith.mulf %22, %3 : vector<16x32xf32>
    %24 = vector.extract_strided_slice %16 {offsets = [0, 96], sizes = [16, 32], strides = [1, 1]} : vector<16x160xf32> to vector<16x32xf32>
    %25 = arith.mulf %24, %4 : vector<16x32xf32>
    %26 = arith.addf %23, %25 : vector<16x32xf32>
    %27 = vector.extract_strided_slice %16 {offsets = [0, 128], sizes = [16, 32], strides = [1, 1]} : vector<16x160xf32> to vector<16x32xf32>
    %28 = tpu.concatenate %21, %21, %21, %21 in 0 : vector<16x32xf32>, vector<16x32xf32>, vector<16x32xf32>, vector<16x32xf32> -> vector<64x32xf32>
    %29 = arith.mulf %28, %1 : vector<64x32xf32>
    %cst_10 = arith.constant dense<0.000000e+00> : vector<64x16xf32>
    %30 = tpu.matmul %29, %26, %cst_10 {dimension_numbers = #tpu.dot_dimension_numbers<[1], [1], [0], [0], [0, 0, 1, 0], [], []>} : vector<64x32xf32>, vector<16x32xf32>, vector<64x16xf32> -> vector<64x16xf32>
    %31 = arith.addf %30, %2 : vector<64x16xf32>
    %cst_11 = arith.constant dense<0xFF800000> : vector<64xf32>
    %32 = vector.multi_reduction <maximumf>, %31, %cst_11 [1] : vector<64x16xf32> to vector<64xf32>
    %33 = vector.shape_cast %32 : vector<64xf32> to vector<64x1xf32>
    %34 = vector.broadcast %33 : vector<64x1xf32> to vector<64x16xf32>
    %35 = arith.subf %31, %34 : vector<64x16xf32>
    %36 = math.exp %35 : vector<64x16xf32>
    %cst_12 = arith.constant dense<0.000000e+00> : vector<64xf32>
    %37 = vector.multi_reduction <add>, %36, %cst_12 [1] : vector<64x16xf32> to vector<64xf32>
    %38 = vector.shape_cast %37 : vector<64xf32> to vector<64x1xf32>
    %39 = vector.broadcast %38 : vector<64x1xf32> to vector<64x16xf32>
    %40 = arith.divf %36, %39 : vector<64x16xf32>
    %cst_13 = arith.constant dense<0.000000e+00> : vector<64x32xf32>
    %41 = tpu.matmul %40, %27, %cst_13 {dimension_numbers = #tpu.dot_dimension_numbers<[1], [0], [0], [1], [0, 0, 1, 1], [], []>} : vector<64x16xf32>, vector<16x32xf32>, vector<64x32xf32> -> vector<64x32xf32>
    %42 = arith.mulf %41, %1 : vector<64x32xf32>
    %43 = vector.extract_strided_slice %42 {offsets = [0, 0], sizes = [16, 32], strides = [1, 1]} : vector<64x32xf32> to vector<16x32xf32>
    %44 = vector.extract_strided_slice %42 {offsets = [16, 0], sizes = [16, 32], strides = [1, 1]} : vector<64x32xf32> to vector<16x32xf32>
    %45 = arith.addf %43, %44 : vector<16x32xf32>
    %46 = vector.extract_strided_slice %42 {offsets = [32, 0], sizes = [16, 32], strides = [1, 1]} : vector<64x32xf32> to vector<16x32xf32>
    %47 = arith.addf %45, %46 : vector<16x32xf32>
    %48 = vector.extract_strided_slice %42 {offsets = [48, 0], sizes = [16, 32], strides = [1, 1]} : vector<64x32xf32> to vector<16x32xf32>
    %49 = arith.addf %47, %48 : vector<16x32xf32>
    %c0_14 = arith.constant 0 : index
    %c288 = arith.constant 288 : index
    %50 = vector.load %arg1[%c0_14, %c288] : memref<32x384xf32, #tpu.memory_space<vmem>>, vector<32x32xf32>
    %cst_15 = arith.constant dense<0.000000e+00> : vector<16x32xf32>
    %51 = tpu.matmul %49, %50, %cst_15 {dimension_numbers = #tpu.dot_dimension_numbers<[1], [0], [0], [1], [0, 0, 1, 1], [], []>} : vector<16x32xf32>, vector<32x32xf32>, vector<16x32xf32> -> vector<16x32xf32>
    %52 = arith.addf %0, %51 : vector<16x32xf32>
    %53 = arith.mulf %52, %52 : vector<16x32xf32>
    %cst_16 = arith.constant dense<0.000000e+00> : vector<16xf32>
    %54 = vector.multi_reduction <add>, %53, %cst_16 [1] : vector<16x32xf32> to vector<16xf32>
    %55 = vector.shape_cast %54 : vector<16xf32> to vector<16x1xf32>
    %cst_17 = arith.constant 3.200000e+01 : f32
    %56 = vector.broadcast %cst_17 : f32 to vector<16x1xf32>
    %57 = arith.divf %55, %56 : vector<16x1xf32>
    %cst_18 = arith.constant 9.99999974E-6 : f32
    %58 = vector.broadcast %cst_18 : f32 to vector<16x1xf32>
    %59 = arith.addf %57, %58 : vector<16x1xf32>
    %60 = math.rsqrt %59 : vector<16x1xf32>
    %61 = vector.broadcast %60 : vector<16x1xf32> to vector<16x32xf32>
    %62 = arith.mulf %52, %61 : vector<16x32xf32>
    %c0_19 = arith.constant 0 : index
    %c0_20 = arith.constant 0 : index
    %63 = vector.load %arg1[%c0_19, %c0_20] : memref<32x384xf32, #tpu.memory_space<vmem>>, vector<32x128xf32>
    %cst_21 = arith.constant dense<0.000000e+00> : vector<16x128xf32>
    %64 = tpu.matmul %62, %63, %cst_21 {dimension_numbers = #tpu.dot_dimension_numbers<[1], [0], [0], [1], [0, 0, 1, 1], [], []>} : vector<16x32xf32>, vector<32x128xf32>, vector<16x128xf32> -> vector<16x128xf32>
    %65 = vector.extract_strided_slice %64 {offsets = [0, 0], sizes = [16, 64], strides = [1, 1]} : vector<16x128xf32> to vector<16x64xf32>
    %66 = vector.extract_strided_slice %64 {offsets = [0, 64], sizes = [16, 64], strides = [1, 1]} : vector<16x128xf32> to vector<16x64xf32>
    %67 = arith.negf %65 : vector<16x64xf32>
    %68 = math.exp %67 : vector<16x64xf32>
    %cst_22 = arith.constant 1.000000e+00 : f32
    %69 = vector.broadcast %cst_22 : f32 to vector<16x64xf32>
    %70 = arith.addf %69, %68 : vector<16x64xf32>
    %71 = arith.divf %69, %70 : vector<16x64xf32>
    %72 = arith.mulf %65, %71 : vector<16x64xf32>
    %73 = arith.mulf %72, %66 : vector<16x64xf32>
    %c0_23 = arith.constant 0 : index
    %c320 = arith.constant 320 : index
    %74 = vector.load %arg1[%c0_23, %c320] : memref<32x384xf32, #tpu.memory_space<vmem>>, vector<32x64xf32>
    %cst_24 = arith.constant dense<0.000000e+00> : vector<16x32xf32>
    %75 = tpu.matmul %73, %74, %cst_24 {dimension_numbers = #tpu.dot_dimension_numbers<[1], [1], [0], [0], [0, 0, 1, 0], [], []>} : vector<16x64xf32>, vector<32x64xf32>, vector<16x32xf32> -> vector<16x32xf32>
    %76 = arith.addf %52, %75 : vector<16x32xf32>
    %c0_25 = arith.constant 0 : index
    %c0_26 = arith.constant 0 : index
    %77 = vector.load %arg3[%c0_25, %c0_26] : memref<16x32xf32, #tpu.memory_space<vmem>>, vector<16x32xf32>
    tpu.vector_store %arg3[%c0_25, %c0_26], %76 {strides = array<i32>} : memref<16x32xf32, #tpu.memory_space<vmem>>, vector<16x32xf32>,
    return
  }
}

</mosaic_0001>

<llo_original>
// kernel: decoder_layer_block.1
$region0: #{decoder_layer_block.1}
  #allocation0 [shape = 'u32[]', space=smem, size = 0x4, offset = 0x4, fixed_abs, tag = 'smem constant byte address 0x4 - core index']
  #allocation1 [shape = 'u32[144,128]{1,0:T(1,128)}', space=vmem, size = 0x12000, scoped, tag = 'internal scratch']
  %s0 = inlined_call_operand.vmem [shape: f32[16,32], index: 0, kind: input, shape index: {}]
  %s1 = inlined_call_operand.vmem [shape: f32[32,384], index: 1, kind: input, shape index: {}]
  %s2 = inlined_call_operand.vmem [shape: f32[64,128], index: 2, kind: input, shape index: {}]
  %s3 = inlined_call_operand.hbm [shape: f32[16,32], index: 3, kind: output, shape index: {}]
  %s4 = sld [smem:[#allocation0]]
  $region22: #{decoder_layer_block.1} parent=0
    _
  %s6 = ssub.s32 1, %s4
  %s7 = scalar_select 0, %s6, %s4
  $region1: #{decoder_layer_block.1} parent=0
    #allocation2 [shape = 'u8[8192]{0}', space=vmem, size = 0x2000, scoped, tag = 'output window, operand 0, single buffered']
    #allocation3 [shape = 's32[1]{0}', space=sflag, size = 0x4, scoped, tag = 'scoped memory for decoder_layer_block.1']
    %8 = vsyncpa [#allocation3], 0
    // Predicated region
    $region2: #{decoder_layer_block.1} parent=1 // pred_check
      _
    $region3: #{decoder_layer_block.1} parent=1 // pred_check_branch
      %10 = sbr.rel (0) target = $region5
    $region4: #{decoder_layer_block.1} parent=1 // pred_region
      _
    $region5: #{decoder_layer_block.1} parent=1 // pred_fallthru
      _
    // Predicated region
    $region6: #{decoder_layer_block.1} parent=1 // pred_check
      _
    $region7: #{decoder_layer_block.1} parent=1 // pred_check_branch
      %12 = sbr.rel (0) target = $region9
    $region8: #{decoder_layer_block.1} parent=1 // pred_region
      _
    $region9: #{decoder_layer_block.1} parent=1 // pred_fallthru
      _
    // Predicated region
    $region10: #{decoder_layer_block.1} parent=1 // pred_check
      _
    $region11: #{decoder_layer_block.1} parent=1 // pred_check_branch
      %14 = sbr.rel (0) target = $region13
    $region12: #{decoder_layer_block.1} parent=1 // pred_region
      _
    $region13: #{decoder_layer_block.1} parent=1 // pred_fallthru
      _
    %v15 = vld [vmem:[%s0] sm:$0xff]
    %v16 = vld [vmem:[%s0 + $0x8] sm:$0xff]
    %v17 = vld [vmem:[%s2] sm:$0xff]
    %v18 = vld [vmem:[%s2 + $0x8] sm:$0xff]
    %v19 = vld [vmem:[%s2 + $0x10] sm:$0xff]
    %v20 = vld [vmem:[%s2 + $0x18] sm:$0xff]
    %v21 = vld [vmem:[%s2 + $0x20] sm:$0xff]
    %v22 = vld [vmem:[%s2 + $0x28] sm:$0xff]
    %v23 = vld [vmem:[%s2 + $0x30] sm:$0xff]
    %v24 = vld [vmem:[%s2 + $0x38] sm:$0xff]
    %v25 = vld [vmem:[%s2] sm:$0xff]
    %v26 = vld [vmem:[%s2 + $0x8] sm:$0xff]
    %v27 = vld [vmem:[%s2 + $0x10] sm:$0xff]
    %v28 = vld [vmem:[%s2 + $0x18] sm:$0xff]
    %v29 = vmul.f32 %v15, %v15
    %v30 = vmul.f32 %v16, %v16
    %vm31 = vcmask 261120
    %v32 = vsel %vm31, %v29, 0.0
    %33 = vadd.xlane.f32.xlu0 %v32
    %v34 = vpop.xlane.xlu0 %33
    %v35 = vsel %vm31, %v30, 0.0
    %36 = vadd.xlane.f32.xlu0 %v35
    %v37 = vpop.xlane.xlu0 %36
    %v38 = vrcp.pop 32.0
    %v39 = vmul.f32 %v34, %v38
    %v40 = vmul.f32 %v37, %v38
    %v41 = vadd.f32 %v39, 1e-05
    %v42 = vadd.f32 %v40, 1e-05
    %v43 = vrsqrt.pop %v41
    %v44 = vrsqrt.pop %v42
    %v45 = vmul.f32 %v15, %v43
    %v46 = vmul.f32 %v16, %v44
    %v47 = vld [vmem:[%s1 + $0x8] sm:$0xff]
    %v48 = vld [vmem:[%s1 + $0x10] sm:$0xff]
    %v49 = vld [vmem:[%s1 + $0x20] sm:$0xff]
    %v50 = vld [vmem:[%s1 + $0x28] sm:$0xff]
    %v51 = vld [vmem:[%s1 + $0x38] sm:$0xff]
    %v52 = vld [vmem:[%s1 + $0x40] sm:$0xff]
    %v53 = vld [vmem:[%s1 + $0x50] sm:$0xff]
    %v54 = vld [vmem:[%s1 + $0x58] sm:$0xff]
    %v56 = vsel %vm31, %v45, 0
    %v59 = vsel %vm31, %v46, 0
    %61 = vmatprep.subr.mxu0 0.0
    %62 = vmatpush1.msra.mxu0 0.0
    %63 = vmatprep.subr.mxu0 0.0
    %64 = vmatpush1.msra.mxu0 0.0
    %65 = vmatprep.subr.mxu0 0.0
    %66 = vmatpush1.msra.mxu0 0.0
    %67 = vmatprep.subr.mxu0 0.0
    %68 = vmatpush1.msra.mxu0 0.0
    %69 = vmatprep.subr.mxu0 0.0
    %70 = vmatpush1.msra.mxu0 0.0
    %71 = vmatprep.subr.mxu0 0.0
    %72 = vmatpush1.msra.mxu0 0.0
    %73 = vmatprep.subr.mxu0 0.0
    %74 = vmatpush1.msra.mxu0 0.0
    %75 = vmatprep.subr.mxu0 0.0
    %76 = vmatpush1.msra.mxu0 0.0
    %77 = vmatprep.subr.mxu0 0.0
    %78 = vmatpush1.msra.mxu0 0.0
    %79 = vmatprep.subr.mxu0 0.0
    %80 = vmatpush1.msra.mxu0 0.0
    %81 = vmatprep.subr.mxu0 0.0
    %82 = vmatpush1.msra.mxu0 0.0
    %83 = vmatprep.subr.mxu0 0.0
    %84 = vmatpush1.msra.mxu0 0.0
    %85 = vmatprep.subr.mxu0 %v54
    %86 = vmatpush1.msra.mxu0 %v53
    %87 = vmatprep.subr.mxu0 %v52
    %88 = vmatpush1.msra.mxu0 %v51
    %89 = vmatprep.subr.mxu0 %v50
    %90 = vmatpush1.msra.mxu0 %v49
    %91 = vmatprep.subr.mxu0 %v48
    %92 = vmatpush1.msra.mxu0 %v47
    %93 = vmatprep.subr.mxu0 0.0
    %94 = vmatpush2.msra.mxu0 0.0
    %95 = vmatprep.subr.mxu0 0.0
    %96 = vmatpush2.msra.mxu0 0.0
    %97 = vmatprep.subr.mxu0 0.0
    %98 = vmatpush2.msra.mxu0 0.0
    %99 = vmatprep.subr.mxu0 0.0
    %100 = vmatpush2.msra.mxu0 0.0
    %101 = vmatprep.subr.mxu0 0.0
    %102 = vmatpush2.msra.mxu0 0.0
    %103 = vmatprep.subr.mxu0 0.0
    %104 = vmatpush2.msra.mxu0 0.0
    %105 = vmatprep.subr.mxu0 0.0
    %106 = vmatpush2.msra.mxu0 0.0
    %107 = vmatprep.subr.mxu0 0.0
    %108 = vmatpush2.msra.mxu0 0.0
    %109 = vmatprep.subr.mxu0 0.0
    %110 = vmatpush2.msra.mxu0 0.0
    %111 = vmatprep.subr.mxu0 0.0
    %112 = vmatpush2.msra.mxu0 0.0
    %113 = vmatprep.subr.mxu0 0.0
    %114 = vmatpush2.msra.mxu0 0.0
    %115 = vmatprep.subr.mxu0 0.0
    %116 = vmatpush2.msra.mxu0 0.0
    %117 = vmatprep.subr.mxu0 0.0
    %118 = vmatpush2.msra.mxu0 0.0
    %119 = vmatprep.subr.mxu0 0.0
    %120 = vmatpush2.msra.mxu0 0.0
    %121 = vmatprep.subr.mxu0 0.0
    %122 = vmatpush2.msra.mxu0 0.0
    %123 = vmatprep.subr.mxu0 0.0
    %124 = vmatpush2.msra.mxu0 0.0
    %125 = vmatprep.mubr.f32.mxu0 0.0
    %126 = vmatmul.mubr.f32.gmra.mxu0 %v56
    %v127 = vpop.f32.mrf.mxu0
    %v128 = vadd.f32 0.0, %v127
    %v129 = vpop.f32.mrf.mxu0
    %v130 = vadd.f32 0.0, %v129
    %131 = vmatprep.mubr.f32.mxu0 0.0
    %132 = vmatmul.mubr.f32.gmra.mxu0 %v59
    %v133 = vpop.f32.mrf.mxu0
    %v134 = vadd.f32 0.0, %v133
    %v135 = vpop.f32.mrf.mxu0
    %v136 = vadd.f32 0.0, %v135
    %137 = vdwg.mxu0
    %140 = vrot.lane.b32.xlu0 %v25, 64
    %v141 = vpop.permute.xlu0 %140
    %142 = vrot.lane.b32.xlu0 %v26, 64
    %v143 = vpop.permute.xlu0 %142
    %v146 = vmul.f32 %v128, %v141
    %v147 = vmul.f32 %v134, %v143
    %150 = vrot.lane.b32.xlu0 %v27, 96
    %v151 = vpop.permute.xlu0 %150
    %152 = vrot.lane.b32.xlu0 %v28, 96
    %v153 = vpop.permute.xlu0 %152
    %v156 = vmul.f32 %v128, %v151
    %v157 = vmul.f32 %v134, %v153
    %160 = vrot.lane.b32.xlu0 %v156, 96
    %v161 = vpop.permute.xlu0 %160
    %162 = vrot.lane.b32.xlu0 %v157, 96
    %v163 = vpop.permute.xlu0 %162
    %v166 = vadd.f32 %v146, %v161
    %v167 = vadd.f32 %v147, %v163
    %v168 = vmul.f32 %v128, %v25
    %v169 = vmul.f32 %v134, %v26
    %170 = vrot.lane.b32.xlu0 %v27, 32
    %v171 = vpop.permute.xlu0 %170
    %172 = vrot.lane.b32.xlu0 %v28, 32
    %v173 = vpop.permute.xlu0 %172
    %v176 = vmul.f32 %v128, %v171
    %v177 = vmul.f32 %v134, %v173
    %180 = vrot.lane.b32.xlu0 %v176, 96
    %v181 = vpop.permute.xlu0 %180
    %182 = vrot.lane.b32.xlu0 %v177, 96
    %v183 = vpop.permute.xlu0 %182
    %v186 = vadd.f32 %v168, %v181
    %v187 = vadd.f32 %v169, %v183
    %v188 = vmul.f32 %v166, %v17
    %v189 = vmul.f32 %v167, %v18
    %v190 = vmul.f32 %v166, %v19
    %v191 = vmul.f32 %v167, %v20
    %v192 = vmul.f32 %v166, %v21
    %v193 = vmul.f32 %v167, %v22
    %v194 = vmul.f32 %v166, %v23
    %v195 = vmul.f32 %v167, %v24
    %198 = vrot.lane.b32.xlu0 %v186, 64
    %v199 = vpop.permute.xlu0 %198
    %200 = vrot.lane.b32.xlu0 %v187, 64
    %v201 = vpop.permute.xlu0 %200
    %210 = vrot.lane.b32.xlu0 %v17, 96
    %v211 = vpop.permute.xlu0 %210
    %212 = vrot.lane.b32.xlu0 %v18, 96
    %v213 = vpop.permute.xlu0 %212
    %214 = vrot.lane.b32.xlu0 %v19, 96
    %v215 = vpop.permute.xlu0 %214
    %216 = vrot.lane.b32.xlu0 %v20, 96
    %v217 = vpop.permute.xlu0 %216
    %218 = vrot.lane.b32.xlu0 %v21, 96
    %v219 = vpop.permute.xlu0 %218
    %220 = vrot.lane.b32.xlu0 %v22, 96
    %v221 = vpop.permute.xlu0 %220
    %222 = vrot.lane.b32.xlu0 %v23, 96
    %v223 = vpop.permute.xlu0 %222
    %224 = vrot.lane.b32.xlu0 %v24, 96
    %v225 = vpop.permute.xlu0 %224
    %v235 = vsel %vm31, %v188, 0
    %v238 = vsel %vm31, %v189, 0
    %v241 = vsel %vm31, %v190, 0
    %v244 = vsel %vm31, %v191, 0
    %v247 = vsel %vm31, %v192, 0
    %v250 = vsel %vm31, %v193, 0
    %v253 = vsel %vm31, %v194, 0
    %v256 = vsel %vm31, %v195, 0
    %v258 = vsel %vm31, %v199, 0
    %v260 = vsel %vm31, %v201, 0
    %262 = vmatprep.subr.mxu0 0.0
    %263 = vmatpush1.xpose.msra.mxu0 0.0
    %264 = vmatprep.subr.mxu0 0.0
    %265 = vmatpush1.xpose.msra.mxu0 0.0
    %266 = vmatprep.subr.mxu0 0.0
    %267 = vmatpush1.xpose.msra.mxu0 0.0
    %268 = vmatprep.subr.mxu0 0.0
    %269 = vmatpush1.xpose.msra.mxu0 0.0
    %270 = vmatprep.subr.mxu0 0.0
    %271 = vmatpush1.xpose.msra.mxu0 0.0
    %272 = vmatprep.subr.mxu0 0.0
    %273 = vmatpush1.xpose.msra.mxu0 0.0
    %274 = vmatprep.subr.mxu0 0.0
    %275 = vmatpush1.xpose.msra.mxu0 0.0
    %276 = vmatprep.subr.mxu0 0.0
    %277 = vmatpush1.xpose.msra.mxu0 0.0
    %278 = vmatprep.subr.mxu0 0.0
    %279 = vmatpush1.xpose.msra.mxu0 0.0
    %280 = vmatprep.subr.mxu0 0.0
    %281 = vmatpush1.xpose.msra.mxu0 0.0
    %282 = vmatprep.subr.mxu0 0.0
    %283 = vmatpush1.xpose.msra.mxu0 0.0
    %284 = vmatprep.subr.mxu0 0.0
    %285 = vmatpush1.xpose.msra.mxu0 0.0
    %286 = vmatprep.subr.mxu0 0.0
    %287 = vmatpush1.xpose.msra.mxu0 0.0
    %288 = vmatprep.subr.mxu0 0.0
    %289 = vmatpush1.xpose.msra.mxu0 0.0
    %290 = vmatprep.subr.mxu0 0.0
    %291 = vmatpush1.xpose.msra.mxu0 %v260
    %292 = vmatprep.subr.mxu0 0.0
    %293 = vmatpush1.xpose.msra.mxu0 %v258
    %294 = vmatprep.subr.mxu0 0.0
    %295 = vmatpush2.xpose.msra.mxu0 0.0
    %296 = vmatprep.subr.mxu0 0.0
    %297 = vmatpush2.xpose.msra.mxu0 0.0
    %298 = vmatprep.subr.mxu0 0.0
    %299 = vmatpush2.xpose.msra.mxu0 0.0
    %300 = vmatprep.subr.mxu0 0.0
    %301 = vmatpush2.xpose.msra.mxu0 0.0
    %302 = vmatprep.subr.mxu0 0.0
    %303 = vmatpush2.xpose.msra.mxu0 0.0
    %304 = vmatprep.subr.mxu0 0.0
    %305 = vmatpush2.xpose.msra.mxu0 0.0
    %306 = vmatprep.subr.mxu0 0.0
    %307 = vmatpush2.xpose.msra.mxu0 0.0
    %308 = vmatprep.subr.mxu0 0.0
    %309 = vmatpush2.xpose.msra.mxu0 0.0
    %310 = vmatprep.subr.mxu0 0.0
    %311 = vmatpush2.xpose.msra.mxu0 0.0
    %312 = vmatprep.subr.mxu0 0.0
    %313 = vmatpush2.xpose.msra.mxu0 0.0
    %314 = vmatprep.subr.mxu0 0.0
    %315 = vmatpush2.xpose.msra.mxu0 0.0
    %316 = vmatprep.subr.mxu0 0.0
    %317 = vmatpush2.xpose.msra.mxu0 0.0
    %318 = vmatprep.subr.mxu0 0.0
    %319 = vmatpush2.xpose.msra.mxu0 0.0
    %320 = vmatprep.subr.mxu0 0.0
    %321 = vmatpush2.xpose.msra.mxu0 0.0
    %322 = vmatprep.subr.mxu0 0.0
    %323 = vmatpush2.xpose.msra.mxu0 0.0
    %324 = vmatprep.subr.mxu0 0.0
    %325 = vmatpush2.xpose.msra.mxu0 0.0
    %326 = vmatprep.mubr.f32.mxu0 0.0
    %327 = vmatmul.mubr.f32.gmra.mxu0 %v235
    %v328 = vpop.f32.mrf.mxu0
    %v329 = vadd.f32 %v211, %v328
    %v330 = vpop.f32.mrf.mxu0
    %331 = vmatprep.mubr.f32.mxu0 0.0
    %332 = vmatmul.mubr.f32.gmra.mxu0 %v238
    %v333 = vpop.f32.mrf.mxu0
    %v334 = vadd.f32 %v213, %v333
    %v335 = vpop.f32.mrf.mxu0
    %336 = vmatprep.mubr.f32.mxu0 0.0
    %337 = vmatmul.mubr.f32.gmra.mxu0 %v241
    %v338 = vpop.f32.mrf.mxu0
    %v339 = vadd.f32 %v215, %v338
    %v340 = vpop.f32.mrf.mxu0
    %341 = vmatprep.mubr.f32.mxu0 0.0
    %342 = vmatmul.mubr.f32.gmra.mxu0 %v244
    %v343 = vpop.f32.mrf.mxu0
    %v344 = vadd.f32 %v217, %v343
    %v345 = vpop.f32.mrf.mxu0
    %346 = vmatprep.mubr.f32.mxu0 0.0
    %347 = vmatmul.mubr.f32.gmra.mxu0 %v247
    %v348 = vpop.f32.mrf.mxu0
    %v349 = vadd.f32 %v219, %v348
    %v350 = vpop.f32.mrf.mxu0
    %351 = vmatprep.mubr.f32.mxu0 0.0
    %352 = vmatmul.mubr.f32.gmra.mxu0 %v250
    %v353 = vpop.f32.mrf.mxu0
    %v354 = vadd.f32 %v221, %v353
    %v355 = vpop.f32.mrf.mxu0
    %356 = vmatprep.mubr.f32.mxu0 0.0
    %357 = vmatmul.mubr.f32.gmra.mxu0 %v253
    %v358 = vpop.f32.mrf.mxu0
    %v359 = vadd.f32 %v223, %v358
    %v360 = vpop.f32.mrf.mxu0
    %361 = vmatprep.mubr.f32.mxu0 0.0
    %362 = vmatmul.mubr.f32.gmra.mxu0 %v256
    %v363 = vpop.f32.mrf.mxu0
    %v364 = vadd.f32 %v225, %v363
    %v365 = vpop.f32.mrf.mxu0
    %366 = vdwg.mxu0
    %vm367 = vcmask 130048
    %v368 = vsel %vm367, %v329, -inf
    %369 = vmax.xlane.f32.xlu0 %v368
    %v370 = vpop.xlane.xlu0 %369
    %v371 = vsel %vm367, %v334, -inf
    %372 = vmax.xlane.f32.xlu0 %v371
    %v373 = vpop.xlane.xlu0 %372
    %v374 = vsel %vm367, %v339, -inf
    %375 = vmax.xlane.f32.xlu0 %v374
    %v376 = vpop.xlane.xlu0 %375
    %v377 = vsel %vm367, %v344, -inf
    %378 = vmax.xlane.f32.xlu0 %v377
    %v379 = vpop.xlane.xlu0 %378
    %v380 = vsel %vm367, %v349, -inf
    %381 = vmax.xlane.f32.xlu0 %v380
    %v382 = vpop.xlane.xlu0 %381
    %v383 = vsel %vm367, %v354, -inf
    %384 = vmax.xlane.f32.xlu0 %v383
    %v385 = vpop.xlane.xlu0 %384
    %v386 = vsel %vm367, %v359, -inf
    %387 = vmax.xlane.f32.xlu0 %v386
    %v388 = vpop.xlane.xlu0 %387
    %v389 = vsel %vm367, %v364, -inf
    %390 = vmax.xlane.f32.xlu0 %v389
    %v391 = vpop.xlane.xlu0 %390
    %v392 = vsub.f32 %v329, %v370
    %v393 = vsub.f32 %v334, %v373
    %v394 = vsub.f32 %v339, %v376
    %v395 = vsub.f32 %v344, %v379
    %v396 = vsub.f32 %v349, %v382
    %v397 = vsub.f32 %v354, %v385
    %v398 = vsub.f32 %v359, %v388
    %v399 = vsub.f32 %v364, %v391
    %v400 = vmul.f32 %v392, 1.442695
    %v401 = vpow.pop %v400
    %v402 = vmul.f32 %v393, 1.442695
    %v403 = vpow.pop %v402
    %v404 = vmul.f32 %v394, 1.442695
    %v405 = vpow.pop %v404
    %v406 = vmul.f32 %v395, 1.442695
    %v407 = vpow.pop %v406
    %v408 = vmul.f32 %v396, 1.442695
    %v409 = vpow.pop %v408
    %v410 = vmul.f32 %v397, 1.442695
    %v411 = vpow.pop %v410
    %v412 = vmul.f32 %v398, 1.442695
    %v413 = vpow.pop %v412
    %v414 = vmul.f32 %v399, 1.442695
    %v415 = vpow.pop %v414
    %v416 = vsel %vm367, %v401, 0.0
    %417 = vadd.xlane.f32.xlu0 %v416
    %v418 = vpop.xlane.xlu0 %417
    %v419 = vsel %vm367, %v403, 0.0
    %420 = vadd.xlane.f32.xlu0 %v419
    %v421 = vpop.xlane.xlu0 %420
    %v422 = vsel %vm367, %v405, 0.0
    %423 = vadd.xlane.f32.xlu0 %v422
    %v424 = vpop.xlane.xlu0 %423
    %v425 = vsel %vm367, %v407, 0.0
    %426 = vadd.xlane.f32.xlu0 %v425
    %v427 = vpop.xlane.xlu0 %426
    %v428 = vsel %vm367, %v409, 0.0
    %429 = vadd.xlane.f32.xlu0 %v428
    %v430 = vpop.xlane.xlu0 %429
    %v431 = vsel %vm367, %v411, 0.0
    %432 = vadd.xlane.f32.xlu0 %v431
    %v433 = vpop.xlane.xlu0 %432
    %v434 = vsel %vm367, %v413, 0.0
    %435 = vadd.xlane.f32.xlu0 %v434
    %v436 = vpop.xlane.xlu0 %435
    %v437 = vsel %vm367, %v415, 0.0
    %438 = vadd.xlane.f32.xlu0 %v437
    %v439 = vpop.xlane.xlu0 %438
    %v440 = vrcp.pop %v418
    %v441 = vmul.f32 %v401, %v440
    %v442 = vrcp.pop %v421
    %v443 = vmul.f32 %v403, %v442
    %v444 = vrcp.pop %v424
    %v445 = vmul.f32 %v405, %v444
    %v446 = vrcp.pop %v427
    %v447 = vmul.f32 %v407, %v446
    %v448 = vrcp.pop %v430
    %v449 = vmul.f32 %v409, %v448
    %v450 = vrcp.pop %v433
    %v451 = vmul.f32 %v411, %v450
    %v452 = vrcp.pop %v436
    %v453 = vmul.f32 %v413, %v452
    %v454 = vrcp.pop %v439
    %v455 = vmul.f32 %v415, %v454
    %v457 = vsel %vm367, %v441, 0
    %v460 = vsel %vm367, %v443, 0
    %v463 = vsel %vm367, %v445, 0
    %v466 = vsel %vm367, %v447, 0
    %v469 = vsel %vm367, %v449, 0
    %v472 = vsel %vm367, %v451, 0
    %v475 = vsel %vm367, %v453, 0
    %v478 = vsel %vm367, %v455, 0
    %480 = vmatprep.subr.mxu0 0.0
    %481 = vmatpush1.msra.mxu0 0.0
    %482 = vmatprep.subr.mxu0 0.0
    %483 = vmatpush1.msra.mxu0 0.0
    %484 = vmatprep.subr.mxu0 0.0
    %485 = vmatpush1.msra.mxu0 0.0
    %486 = vmatprep.subr.mxu0 0.0
    %487 = vmatpush1.msra.mxu0 0.0
    %488 = vmatprep.subr.mxu0 0.0
    %489 = vmatpush1.msra.mxu0 0.0
    %490 = vmatprep.subr.mxu0 0.0
    %491 = vmatpush1.msra.mxu0 0.0
    %492 = vmatprep.subr.mxu0 0.0
    %493 = vmatpush1.msra.mxu0 0.0
    %494 = vmatprep.subr.mxu0 0.0
    %495 = vmatpush1.msra.mxu0 0.0
    %496 = vmatprep.subr.mxu0 0.0
    %497 = vmatpush1.msra.mxu0 0.0
    %498 = vmatprep.subr.mxu0 0.0
    %499 = vmatpush1.msra.mxu0 0.0
    %500 = vmatprep.subr.mxu0 0.0
    %501 = vmatpush1.msra.mxu0 0.0
    %502 = vmatprep.subr.mxu0 0.0
    %503 = vmatpush1.msra.mxu0 0.0
    %504 = vmatprep.subr.mxu0 0.0
    %505 = vmatpush1.msra.mxu0 0.0
    %506 = vmatprep.subr.mxu0 0.0
    %507 = vmatpush1.msra.mxu0 0.0
    %508 = vmatprep.subr.mxu0 0.0
    %509 = vmatpush1.msra.mxu0 %v136
    %510 = vmatprep.subr.mxu0 0.0
    %511 = vmatpush1.msra.mxu0 %v130
    %512 = vmatprep.subr.mxu0 0.0
    %513 = vmatpush2.msra.mxu0 0.0
    %514 = vmatprep.subr.mxu0 0.0
    %515 = vmatpush2.msra.mxu0 0.0
    %516 = vmatprep.subr.mxu0 0.0
    %517 = vmatpush2.msra.mxu0 0.0
    %518 = vmatprep.subr.mxu0 0.0
    %519 = vmatpush2.msra.mxu0 0.0
    %520 = vmatprep.subr.mxu0 0.0
    %521 = vmatpush2.msra.mxu0 0.0
    %522 = vmatprep.subr.mxu0 0.0
    %523 = vmatpush2.msra.mxu0 0.0
    %524 = vmatprep.subr.mxu0 0.0
    %525 = vmatpush2.msra.mxu0 0.0
    %526 = vmatprep.subr.mxu0 0.0
    %527 = vmatpush2.msra.mxu0 0.0
    %528 = vmatprep.subr.mxu0 0.0
    %529 = vmatpush2.msra.mxu0 0.0
    %530 = vmatprep.subr.mxu0 0.0
    %531 = vmatpush2.msra.mxu0 0.0
    %532 = vmatprep.subr.mxu0 0.0
    %533 = vmatpush2.msra.mxu0 0.0
    %534 = vmatprep.subr.mxu0 0.0
    %535 = vmatpush2.msra.mxu0 0.0
    %536 = vmatprep.subr.mxu0 0.0
    %537 = vmatpush2.msra.mxu0 0.0
    %538 = vmatprep.subr.mxu0 0.0
    %539 = vmatpush2.msra.mxu0 0.0
    %540 = vmatprep.subr.mxu0 0.0
    %541 = vmatpush2.msra.mxu0 0.0
    %542 = vmatprep.subr.mxu0 0.0
    %543 = vmatpush2.msra.mxu0 0.0
    %544 = vmatprep.mubr.f32.mxu0 0.0
    %545 = vmatmul.mubr.f32.gmra.mxu0 %v457
    %v546 = vpop.f32.mrf.mxu0
    %v547 = vadd.f32 0.0, %v546
    %v548 = vpop.f32.mrf.mxu0
    %549 = vmatprep.mubr.f32.mxu0 0.0
    %550 = vmatmul.mubr.f32.gmra.mxu0 %v460
    %v551 = vpop.f32.mrf.mxu0
    %v552 = vadd.f32 0.0, %v551
    %v553 = vpop.f32.mrf.mxu0
    %554 = vmatprep.mubr.f32.mxu0 0.0
    %555 = vmatmul.mubr.f32.gmra.mxu0 %v463
    %v556 = vpop.f32.mrf.mxu0
    %v557 = vadd.f32 0.0, %v556
    %v558 = vpop.f32.mrf.mxu0
    %559 = vmatprep.mubr.f32.mxu0 0.0
    %560 = vmatmul.mubr.f32.gmra.mxu0 %v466
    %v561 = vpop.f32.mrf.mxu0
    %v562 = vadd.f32 0.0, %v561
    %v563 = vpop.f32.mrf.mxu0
    %564 = vmatprep.mubr.f32.mxu0 0.0
    %565 = vmatmul.mubr.f32.gmra.mxu0 %v469
    %v566 = vpop.f32.mrf.mxu0
    %v567 = vadd.f32 0.0, %v566
    %v568 = vpop.f32.mrf.mxu0
    %569 = vmatprep.mubr.f32.mxu0 0.0
    %570 = vmatmul.mubr.f32.gmra.mxu0 %v472
    %v571 = vpop.f32.mrf.mxu0
    %v572 = vadd.f32 0.0, %v571
    %v573 = vpop.f32.mrf.mxu0
    %574 = vmatprep.mubr.f32.mxu0 0.0
    %575 = vmatmul.mubr.f32.gmra.mxu0 %v475
    %v576 = vpop.f32.mrf.mxu0
    %v577 = vadd.f32 0.0, %v576
    %v578 = vpop.f32.mrf.mxu0
    %579 = vmatprep.mubr.f32.mxu0 0.0
    %580 = vmatmul.mubr.f32.gmra.mxu0 %v478
    %v581 = vpop.f32.mrf.mxu0
    %v582 = vadd.f32 0.0, %v581
    %v583 = vpop.f32.mrf.mxu0
    %584 = vdwg.mxu0
    %v585 = vmul.f32 %v547, %v17
    %v586 = vmul.f32 %v552, %v18
    %v587 = vmul.f32 %v557, %v19
    %v588 = vmul.f32 %v562, %v20
    %v589 = vmul.f32 %v567, %v21
    %v590 = vmul.f32 %v572, %v22
    %v591 = vmul.f32 %v577, %v23
    %v592 = vmul.f32 %v582, %v24
    %v593 = vadd.f32 %v585, %v587
    %v594 = vadd.f32 %v586, %v588
    %v595 = vadd.f32 %v593, %v589
    %v596 = vadd.f32 %v594, %v590
    %v597 = vadd.f32 %v595, %v591
    %v598 = vadd.f32 %v596, %v592
    %603 = vrot.lane.b32.xlu0 %v48, 96
    %v604 = vpop.permute.xlu0 %603
    %605 = vrot.lane.b32.xlu0 %v50, 96
    %v606 = vpop.permute.xlu0 %605
    %607 = vrot.lane.b32.xlu0 %v52, 96
    %v608 = vpop.permute.xlu0 %607
    %609 = vrot.lane.b32.xlu0 %v54, 96
    %v610 = vpop.permute.xlu0 %609
    %v616 = vsel %vm31, %v597, 0
    %v619 = vsel %vm31, %v598, 0
    %621 = vmatprep.subr.mxu0 0.0
    %622 = vmatpush1.msra.mxu0 0.0
    %623 = vmatprep.subr.mxu0 0.0
    %624 = vmatpush1.msra.mxu0 0.0
    %625 = vmatprep.subr.mxu0 0.0
    %626 = vmatpush1.msra.mxu0 0.0
    %627 = vmatprep.subr.mxu0 0.0
    %628 = vmatpush1.msra.mxu0 0.0
    %629 = vmatprep.subr.mxu0 0.0
    %630 = vmatpush1.msra.mxu0 0.0
    %631 = vmatprep.subr.mxu0 0.0
    %632 = vmatpush1.msra.mxu0 0.0
    %633 = vmatprep.subr.mxu0 0.0
    %634 = vmatpush1.msra.mxu0 0.0
    %635 = vmatprep.subr.mxu0 0.0
    %636 = vmatpush1.msra.mxu0 0.0
    %637 = vmatprep.subr.mxu0 0.0
    %638 = vmatpush1.msra.mxu0 0.0
    %639 = vmatprep.subr.mxu0 0.0
    %640 = vmatpush1.msra.mxu0 0.0
    %641 = vmatprep.subr.mxu0 0.0
    %642 = vmatpush1.msra.mxu0 0.0
    %643 = vmatprep.subr.mxu0 0.0
    %644 = vmatpush1.msra.mxu0 0.0
    %645 = vmatprep.subr.mxu0 0.0
    %646 = vmatpush1.msra.mxu0 %v610
    %647 = vmatprep.subr.mxu0 0.0
    %648 = vmatpush1.msra.mxu0 %v608
    %649 = vmatprep.subr.mxu0 0.0
    %650 = vmatpush1.msra.mxu0 %v606
    %651 = vmatprep.subr.mxu0 0.0
    %652 = vmatpush1.msra.mxu0 %v604
    %653 = vmatprep.subr.mxu0 0.0
    %654 = vmatpush2.msra.mxu0 0.0
    %655 = vmatprep.subr.mxu0 0.0
    %656 = vmatpush2.msra.mxu0 0.0
    %657 = vmatprep.subr.mxu0 0.0
    %658 = vmatpush2.msra.mxu0 0.0
    %659 = vmatprep.subr.mxu0 0.0
    %660 = vmatpush2.msra.mxu0 0.0
    %661 = vmatprep.subr.mxu0 0.0
    %662 = vmatpush2.msra.mxu0 0.0
    %663 = vmatprep.subr.mxu0 0.0
    %664 = vmatpush2.msra.mxu0 0.0
    %665 = vmatprep.subr.mxu0 0.0
    %666 = vmatpush2.msra.mxu0 0.0
    %667 = vmatprep.subr.mxu0 0.0
    %668 = vmatpush2.msra.mxu0 0.0
    %669 = vmatprep.subr.mxu0 0.0
    %670 = vmatpush2.msra.mxu0 0.0
    %671 = vmatprep.subr.mxu0 0.0
    %672 = vmatpush2.msra.mxu0 0.0
    %673 = vmatprep.subr.mxu0 0.0
    %674 = vmatpush2.msra.mxu0 0.0
    %675 = vmatprep.subr.mxu0 0.0
    %676 = vmatpush2.msra.mxu0 0.0
    %677 = vmatprep.subr.mxu0 0.0
    %678 = vmatpush2.msra.mxu0 0.0
    %679 = vmatprep.subr.mxu0 0.0
    %680 = vmatpush2.msra.mxu0 0.0
    %681 = vmatprep.subr.mxu0 0.0
    %682 = vmatpush2.msra.mxu0 0.0
    %683 = vmatprep.subr.mxu0 0.0
    %684 = vmatpush2.msra.mxu0 0.0
    %685 = vmatprep.mubr.f32.mxu0 0.0
    %686 = vmatmul.mubr.f32.gmra.mxu0 %v616
    %v687 = vpop.f32.mrf.mxu0
    %v688 = vadd.f32 0.0, %v687
    %v689 = vpop.f32.mrf.mxu0
    %690 = vmatprep.mubr.f32.mxu0 0.0
    %691 = vmatmul.mubr.f32.gmra.mxu0 %v619
    %v692 = vpop.f32.mrf.mxu0
    %v693 = vadd.f32 0.0, %v692
    %v694 = vpop.f32.mrf.mxu0
    %695 = vdwg.mxu0
    %v696 = vadd.f32 %v15, %v688
    %v697 = vadd.f32 %v16, %v693
    %v698 = vmul.f32 %v696, %v696
    %v699 = vmul.f32 %v697, %v697
    %v700 = vsel %vm31, %v698, 0.0
    %701 = vadd.xlane.f32.xlu0 %v700
    %v702 = vpop.xlane.xlu0 %701
    %v703 = vsel %vm31, %v699, 0.0
    %704 = vadd.xlane.f32.xlu0 %v703
    %v705 = vpop.xlane.xlu0 %704
    %v706 = vmul.f32 %v702, %v38
    %v707 = vmul.f32 %v705, %v38
    %v708 = vadd.f32 %v706, 1e-05
    %v709 = vadd.f32 %v707, 1e-05
    %v710 = vrsqrt.pop %v708
    %v711 = vrsqrt.pop %v709
    %v712 = vmul.f32 %v696, %v710
    %v713 = vmul.f32 %v697, %v711
    %v714 = vld [vmem:[%s1] sm:$0xff]
    %v715 = vld [vmem:[%s1 + $0x18] sm:$0xff]
    %v716 = vld [vmem:[%s1 + $0x30] sm:$0xff]
    %v717 = vld [vmem:[%s1 + $0x48] sm:$0xff]
    %v719 = vsel %vm31, %v712, 0
    %v722 = vsel %vm31, %v713, 0
    %724 = vmatprep.subr.mxu0 0.0
    %725 = vmatpush1.msra.mxu0 0.0
    %726 = vmatprep.subr.mxu0 0.0
    %727 = vmatpush1.msra.mxu0 0.0
    %728 = vmatprep.subr.mxu0 0.0
    %729 = vmatpush1.msra.mxu0 0.0
    %730 = vmatprep.subr.mxu0 0.0
    %731 = vmatpush1.msra.mxu0 0.0
    %732 = vmatprep.subr.mxu0 0.0
    %733 = vmatpush1.msra.mxu0 0.0
    %734 = vmatprep.subr.mxu0 0.0
    %735 = vmatpush1.msra.mxu0 0.0
    %736 = vmatprep.subr.mxu0 0.0
    %737 = vmatpush1.msra.mxu0 0.0
    %738 = vmatprep.subr.mxu0 0.0
    %739 = vmatpush1.msra.mxu0 0.0
    %740 = vmatprep.subr.mxu0 0.0
    %741 = vmatpush1.msra.mxu0 0.0
    %742 = vmatprep.subr.mxu0 0.0
    %743 = vmatpush1.msra.mxu0 0.0
    %744 = vmatprep.subr.mxu0 0.0
    %745 = vmatpush1.msra.mxu0 0.0
    %746 = vmatprep.subr.mxu0 0.0
    %747 = vmatpush1.msra.mxu0 0.0
    %748 = vmatprep.subr.mxu0 0.0
    %749 = vmatpush1.msra.mxu0 %v717
    %750 = vmatprep.subr.mxu0 0.0
    %751 = vmatpush1.msra.mxu0 %v716
    %752 = vmatprep.subr.mxu0 0.0
    %753 = vmatpush1.msra.mxu0 %v715
    %754 = vmatprep.subr.mxu0 0.0
    %755 = vmatpush1.msra.mxu0 %v714
    %756 = vmatprep.subr.mxu0 0.0
    %757 = vmatpush2.msra.mxu0 0.0
    %758 = vmatprep.subr.mxu0 0.0
    %759 = vmatpush2.msra.mxu0 0.0
    %760 = vmatprep.subr.mxu0 0.0
    %761 = vmatpush2.msra.mxu0 0.0
    %762 = vmatprep.subr.mxu0 0.0
    %763 = vmatpush2.msra.mxu0 0.0
    %764 = vmatprep.subr.mxu0 0.0
    %765 = vmatpush2.msra.mxu0 0.0
    %766 = vmatprep.subr.mxu0 0.0
    %767 = vmatpush2.msra.mxu0 0.0
    %768 = vmatprep.subr.mxu0 0.0
    %769 = vmatpush2.msra.mxu0 0.0
    %770 = vmatprep.subr.mxu0 0.0
    %771 = vmatpush2.msra.mxu0 0.0
    %772 = vmatprep.subr.mxu0 0.0
    %773 = vmatpush2.msra.mxu0 0.0
    %774 = vmatprep.subr.mxu0 0.0
    %775 = vmatpush2.msra.mxu0 0.0
    %776 = vmatprep.subr.mxu0 0.0
    %777 = vmatpush2.msra.mxu0 0.0
    %778 = vmatprep.subr.mxu0 0.0
    %779 = vmatpush2.msra.mxu0 0.0
    %780 = vmatprep.subr.mxu0 0.0
    %781 = vmatpush2.msra.mxu0 0.0
    %782 = vmatprep.subr.mxu0 0.0
    %783 = vmatpush2.msra.mxu0 0.0
    %784 = vmatprep.subr.mxu0 0.0
    %785 = vmatpush2.msra.mxu0 0.0
    %786 = vmatprep.subr.mxu0 0.0
    %787 = vmatpush2.msra.mxu0 0.0
    %788 = vmatprep.mubr.f32.mxu0 0.0
    %789 = vmatmul.mubr.f32.gmra.mxu0 %v719
    %v790 = vpop.f32.mrf.mxu0
    %v791 = vadd.f32 0.0, %v790
    %v792 = vpop.f32.mrf.mxu0
    %793 = vmatprep.mubr.f32.mxu0 0.0
    %794 = vmatmul.mubr.f32.gmra.mxu0 %v722
    %v795 = vpop.f32.mrf.mxu0
    %v796 = vadd.f32 0.0, %v795
    %v797 = vpop.f32.mrf.mxu0
    %798 = vdwg.mxu0
    %v799 = vxor.u32 %v791, 2147483648
    %v800 = vxor.u32 %v796, 2147483648
    %v801 = vmul.f32 %v799, 1.442695
    %v802 = vpow.pop %v801
    %v803 = vmul.f32 %v800, 1.442695
    %v804 = vpow.pop %v803
    %v805 = vadd.f32 %v802, 1.0
    %v806 = vadd.f32 %v804, 1.0
    %v807 = vrcp.pop %v805
    %v808 = vmul.f32 1.0, %v807
    %v809 = vrcp.pop %v806
    %v810 = vmul.f32 1.0, %v809
    %v811 = vmul.f32 %v791, %v808
    %v812 = vmul.f32 %v796, %v810
    %815 = vrot.lane.b32.xlu0 %v791, 64
    %v816 = vpop.permute.xlu0 %815
    %817 = vrot.lane.b32.xlu0 %v796, 64
    %v818 = vpop.permute.xlu0 %817
    %v821 = vmul.f32 %v811, %v816
    %v822 = vmul.f32 %v812, %v818
    %823 = vrot.lane.b32.xlu0 %v48, 64
    %v824 = vpop.permute.xlu0 %823
    %825 = vrot.lane.b32.xlu0 %v50, 64
    %v826 = vpop.permute.xlu0 %825
    %827 = vrot.lane.b32.xlu0 %v52, 64
    %v828 = vpop.permute.xlu0 %827
    %829 = vrot.lane.b32.xlu0 %v54, 64
    %v830 = vpop.permute.xlu0 %829
    %vm831 = vcmask 523264
    %v833 = vsel %vm831, %v821, 0
    %v836 = vsel %vm831, %v822, 0
    %v838 = vsel %vm831, %v824, 0
    %v840 = vsel %vm831, %v826, 0
    %v842 = vsel %vm831, %v828, 0
    %v844 = vsel %vm831, %v830, 0
    %846 = vmatprep.subr.mxu0 0.0
    %847 = vmatpush1.xpose.msra.mxu0 0.0
    %848 = vmatprep.subr.mxu0 0.0
    %849 = vmatpush1.xpose.msra.mxu0 0.0
    %850 = vmatprep.subr.mxu0 0.0
    %851 = vmatpush1.xpose.msra.mxu0 0.0
    %852 = vmatprep.subr.mxu0 0.0
    %853 = vmatpush1.xpose.msra.mxu0 0.0
    %854 = vmatprep.subr.mxu0 0.0
    %855 = vmatpush1.xpose.msra.mxu0 0.0
    %856 = vmatprep.subr.mxu0 0.0
    %857 = vmatpush1.xpose.msra.mxu0 0.0
    %858 = vmatprep.subr.mxu0 0.0
    %859 = vmatpush1.xpose.msra.mxu0 0.0
    %860 = vmatprep.subr.mxu0 0.0
    %861 = vmatpush1.xpose.msra.mxu0 0.0
    %862 = vmatprep.subr.mxu0 0.0
    %863 = vmatpush1.xpose.msra.mxu0 0.0
    %864 = vmatprep.subr.mxu0 0.0
    %865 = vmatpush1.xpose.msra.mxu0 0.0
    %866 = vmatprep.subr.mxu0 0.0
    %867 = vmatpush1.xpose.msra.mxu0 0.0
    %868 = vmatprep.subr.mxu0 0.0
    %869 = vmatpush1.xpose.msra.mxu0 0.0
    %870 = vmatprep.subr.mxu0 0.0
    %871 = vmatpush1.xpose.msra.mxu0 %v844
    %872 = vmatprep.subr.mxu0 0.0
    %873 = vmatpush1.xpose.msra.mxu0 %v842
    %874 = vmatprep.subr.mxu0 0.0
    %875 = vmatpush1.xpose.msra.mxu0 %v840
    %876 = vmatprep.subr.mxu0 0.0
    %877 = vmatpush1.xpose.msra.mxu0 %v838
    %878 = vmatprep.subr.mxu0 0.0
    %879 = vmatpush2.xpose.msra.mxu0 0.0
    %880 = vmatprep.subr.mxu0 0.0
    %881 = vmatpush2.xpose.msra.mxu0 0.0
    %882 = vmatprep.subr.mxu0 0.0
    %883 = vmatpush2.xpose.msra.mxu0 0.0
    %884 = vmatprep.subr.mxu0 0.0
    %885 = vmatpush2.xpose.msra.mxu0 0.0
    %886 = vmatprep.subr.mxu0 0.0
    %887 = vmatpush2.xpose.msra.mxu0 0.0
    %888 = vmatprep.subr.mxu0 0.0
    %889 = vmatpush2.xpose.msra.mxu0 0.0
    %890 = vmatprep.subr.mxu0 0.0
    %891 = vmatpush2.xpose.msra.mxu0 0.0
    %892 = vmatprep.subr.mxu0 0.0
    %893 = vmatpush2.xpose.msra.mxu0 0.0
    %894 = vmatprep.subr.mxu0 0.0
    %895 = vmatpush2.xpose.msra.mxu0 0.0
    %896 = vmatprep.subr.mxu0 0.0
    %897 = vmatpush2.xpose.msra.mxu0 0.0
    %898 = vmatprep.subr.mxu0 0.0
    %899 = vmatpush2.xpose.msra.mxu0 0.0
    %900 = vmatprep.subr.mxu0 0.0
    %901 = vmatpush2.xpose.msra.mxu0 0.0
    %902 = vmatprep.subr.mxu0 0.0
    %903 = vmatpush2.xpose.msra.mxu0 0.0
    %904 = vmatprep.subr.mxu0 0.0
    %905 = vmatpush2.xpose.msra.mxu0 0.0
    %906 = vmatprep.subr.mxu0 0.0
    %907 = vmatpush2.xpose.msra.mxu0 0.0
    %908 = vmatprep.subr.mxu0 0.0
    %909 = vmatpush2.xpose.msra.mxu0 0.0
    %910 = vmatprep.mubr.f32.mxu0 0.0
    %911 = vmatmul.mubr.f32.gmra.mxu0 %v833
    %v912 = vpop.f32.mrf.mxu0
    %v913 = vadd.f32 0.0, %v912
    %v914 = vpop.f32.mrf.mxu0
    %915 = vmatprep.mubr.f32.mxu0 0.0
    %916 = vmatmul.mubr.f32.gmra.mxu0 %v836
    %v917 = vpop.f32.mrf.mxu0
    %v918 = vadd.f32 0.0, %v917
    %v919 = vpop.f32.mrf.mxu0
    %920 = vdwg.mxu0
    %v921 = vadd.f32 %v696, %v913
    %v922 = vadd.f32 %v697, %v918
    %923 = vst.msk [vmem:[#allocation2] sm:$0xff] %vm31, %v921
    %924 = vst.msk [vmem:[#allocation2 + $0x8] sm:$0xff] %vm31, %v922
    // Predicated region
    $region14: #{decoder_layer_block.1} parent=1 // pred_check
      _
    $region15: #{decoder_layer_block.1} parent=1 // pred_check_branch
      %926 = sbr.rel (0) target = $region17
    $region16: #{decoder_layer_block.1} parent=1 // pred_region
      %s928 = ssub.s32 256, 256
      %929 = vsyncadd [#allocation3], %s928
      %s930 = sshll.u32 [#allocation2], 4
      %s931 = int_to_ptr.vmem [resolvable:$true] %s930
      %936 = dma.vmem_to_hbm [thread:$0]  %s931, 256, %s3, [#allocation3], 128, 128, 8
    $region17: #{decoder_layer_block.1} parent=1 // pred_fallthru
      _
    // Predicated region
    $region18: #{decoder_layer_block.1} parent=1 // pred_check
      _
    $region19: #{decoder_layer_block.1} parent=1 // pred_check_branch
      %938 = sbr.rel (0) target = $region21
    $region20: #{decoder_layer_block.1} parent=1 // pred_region
      %939 = dma.done [#allocation3], 256
    $region21: #{decoder_layer_block.1} parent=1 // pred_fallthru
      _
    %940 = vsyncpa [#allocation3], 1

</llo_original>
